<compile_context>
chip_gen: v5e
topology: v5e:2x2
jax: 0.10.0
libtpu: 0.0.40
codegen_flags: <defaults>
</compile_context>

<pallas_src>
import functools
import math

import jax
import jax.numpy as jnp
from jax.experimental import pallas as pl
from jax.experimental.pallas import tpu as pltpu


def _mha_kernel(x_ref, wqkv_ref, wo_ref, b_ref, o_ref, *,
                num_heads, batch, seq_len):
    """Single invocation: all batches and all heads.

    x_ref    : (B*L, E)   bf16
    wqkv_ref : (E, 3E)    bf16  (q columns pre-scaled by 1/sqrt(D))
    wo_ref   : (H, D, E)  bf16  (per-head slices of the output projection)
    b_ref    : (1, E)     f32
    o_ref    : (B*L, E)   f32
    """
    BL, E = x_ref.shape
    D = E // num_heads

    x = x_ref[...]                                           # (B*L, E) bf16

    # Fused Q/K/V projection: one MXU pass over the 3E-wide bf16 slab.
    qkv = jnp.dot(x, wqkv_ref[...],
                  preferred_element_type=jnp.float32)        # (B*L, 3E) f32

    wo_all = wo_ref[...]                                     # (H, D, E) bf16

    acc = jnp.zeros((BL, E), jnp.float32)
    for h in range(num_heads):                               # static offsets
        q = qkv[:, h * D:(h + 1) * D]                        # (B*L, D) f32
        k = qkv[:, E + h * D:E + (h + 1) * D]
        v = qkv[:, 2 * E + h * D:2 * E + (h + 1) * D]

        # (B*L, D) -> (B, L, D): sublane split with inner dim == 8 (layout
        # preserving).  Cast to bf16 for the MXU.
        qb = q.reshape(batch, seq_len, D).astype(jnp.bfloat16)
        kb = k.reshape(batch, seq_len, D).astype(jnp.bfloat16)
        vb = v.reshape(batch, seq_len, D).astype(jnp.bfloat16)

        # Batched scores over the batch axis (scale already folded into W_q).
        s = jnp.einsum('bld,bmd->blm', qb, kb,
                       preferred_element_type=jnp.float32)   # (B, L, L)

        # Numerically stable softmax with exact normalization.
        m = jnp.max(s, axis=-1, keepdims=True)
        e = jnp.exp(s - m)
        p = e / jnp.sum(e, axis=-1, keepdims=True)

        ctx = jnp.einsum('blm,bmd->bld', p.astype(jnp.bfloat16), vb,
                         preferred_element_type=jnp.float32) # (B, L, D)

        # Fused head contraction: ctx_h @ Wo[h] accumulated; no concat, no
        # lane-dim scratch writes.
        ctx2 = ctx.reshape(BL, D).astype(jnp.bfloat16)       # (B*L, D)
        acc = acc + jnp.dot(ctx2, wo_all[h],
                            preferred_element_type=jnp.float32)

    # Single store of the output block (bias broadcast-added once).
    o_ref[...] = (acc + b_ref[...]).astype(o_ref.dtype)


def build_mha_params(wq, wk, wv, wo, bo):
    """One-time weight layout work (do NOT rebuild per call).

    wq/wk/wv : (H, E, D)   per-head projection weights (q_h = x @ wq[h])
    wo       : (H, D, E)   per-head slices of the output linear
    bo       : (1, E)

    Returns (w_qkv bf16 (E, 3E), wo_heads bf16 (H, D, E), bo f32 (1, E)).
    """
    H, E, D = wq.shape
    scale = 1.0 / math.sqrt(D)
    # Column block h*D:(h+1)*D of each slab equals w*[h]; q columns pre-scaled.
    w_q = jnp.transpose(wq, (1, 0, 2)).reshape(E, H * D) * scale
    w_k = jnp.transpose(wk, (1, 0, 2)).reshape(E, H * D)
    w_v = jnp.transpose(wv, (1, 0, 2)).reshape(E, H * D)
    w_qkv = jnp.concatenate([w_q, w_k, w_v], axis=-1).astype(jnp.bfloat16)
    wo_heads = wo.astype(jnp.bfloat16)
    return w_qkv, wo_heads, bo.astype(jnp.float32)


def multi_head_attention(x, w_qkv, wo_heads, bo):
    """x: [B, L, E] f32; params from `build_mha_params`.  Returns [B, L, E] f32."""
    B, L, E = x.shape
    H = wo_heads.shape[0]

    # Flatten batch into the sublane (M) dim outside the kernel; bf16 feed.
    x2 = x.reshape(B * L, E).astype(jnp.bfloat16)

    kernel = functools.partial(_mha_kernel, num_heads=H, batch=B, seq_len=L)

    out = pl.pallas_call(
        kernel,
        out_shape=jax.ShapeDtypeStruct((B * L, E), jnp.float32),
        # No grid: single invocation, whole (tiny) operands resident in VMEM.
        in_specs=[
            pl.BlockSpec(memory_space=pltpu.MemorySpace.VMEM),  # x (B*L, E)
            pl.BlockSpec(memory_space=pltpu.MemorySpace.VMEM),  # W_qkv (E, 3E)
            pl.BlockSpec(memory_space=pltpu.MemorySpace.VMEM),  # Wo (H, D, E)
            pl.BlockSpec(memory_space=pltpu.MemorySpace.VMEM),  # bias (1, E)
        ],
        out_specs=pl.BlockSpec(memory_space=pltpu.MemorySpace.VMEM),
        compiler_params=pltpu.CompilerParams(
            vmem_limit_bytes=32 * 1024 * 1024,
        ),
    )(x2, w_qkv, wo_heads, bo)

    return out.reshape(B, L, E)


def _reference(x, wq, wk, wv, wo, bo):
    """Pure-JAX f32 reference reproducing the PyTorch forward (eval mode)."""
    H, E, D = wq.shape
    head_outs = []
    for h in range(H):
        q = x @ wq[h]
        k = x @ wk[h]
        v = x @ wv[h]
        s = (q @ jnp.swapaxes(k, -2, -1)) / math.sqrt(D)
        a = jax.nn.softmax(s, axis=-1)
        head_outs.append(a @ v)
    concat = jnp.concatenate(head_outs, axis=-1)        # [B, L, E]
    wo_full = wo.reshape(E, E)                          # [H*D, E] == [E, E]
    return concat @ wo_full + bo[0]


if __name__ == "__main__":
    # Small shapes consistent with the module's forward:
    # batch=2, seq length=8, embed_dim=32, num_heads=4  => head_size=8
    B, L, E, H = 2, 8, 32, 4
    D = E // H

    key = jax.random.PRNGKey(0)
    kx, kq, kk, kv, kw, kb = jax.random.split(key, 6)

    x = jax.random.normal(kx, (B, L, E), dtype=jnp.float32)

    # Deterministic parameter init (synthetic; nn.Linear-style scale).
    scale_in = 1.0 / math.sqrt(E)
    wq = jax.random.uniform(kq, (H, E, D), jnp.float32, -scale_in, scale_in)
    wk = jax.random.uniform(kk, (H, E, D), jnp.float32, -scale_in, scale_in)
    wv = jax.random.uniform(kv, (H, E, D), jnp.float32, -scale_in, scale_in)
    wo = jax.random.uniform(kw, (H, D, E), jnp.float32, -scale_in, scale_in)
    bo = jax.random.uniform(kb, (1, E), jnp.float32, -scale_in, scale_in)

    # One-time weight layout / bf16 cast (cached across calls).
    w_qkv, wo_heads, bo_f32 = build_mha_params(wq, wk, wv, wo, bo)

    out = multi_head_attention(x, w_qkv, wo_heads, bo_f32)
    out = jax.block_until_ready(out)

    ref = _reference(x, wq, wk, wv, wo, bo)
    assert out.shape == (B, L, E)
    # Tolerance accounts for bf16 MXU operands (f32 accumulation).
    assert jnp.allclose(out, ref, atol=3e-2, rtol=3e-2), "mismatch vs reference"

    print("KERNEL_OK")
</pallas_src>

<mosaic_0001>
module attributes {stable_mosaic.version = 11 : i64} {
  func.func @_mha_kernel(%arg0: memref<16x32xbf16, #tpu.memory_space<vmem>>, %arg1: memref<32x96xbf16, #tpu.memory_space<vmem>>, %arg2: memref<4x8x32xbf16, #tpu.memory_space<vmem>>, %arg3: memref<1x32xf32, #tpu.memory_space<vmem>>, %arg4: memref<16x32xf32, #tpu.memory_space<vmem>>) attributes {dimension_semantics = [], scalar_prefetch = 0 : i64, scratch_operands = 0 : i64, tpu.core_type = #tpu.core_type<tc>} {
    %c0 = arith.constant 0 : index
    %c0_0 = arith.constant 0 : index
    %0 = vector.load %arg0[%c0, %c0_0] : memref<16x32xbf16, #tpu.memory_space<vmem>>, vector<16x32xbf16>
    %c0_1 = arith.constant 0 : index
    %c0_2 = arith.constant 0 : index
    %1 = vector.load %arg1[%c0_1, %c0_2] : memref<32x96xbf16, #tpu.memory_space<vmem>>, vector<32x96xbf16>
    %cst = arith.constant dense<0.000000e+00> : vector<16x96xf32>
    %2 = tpu.matmul %0, %1, %cst {dimension_numbers = #tpu.dot_dimension_numbers<[1], [0], [0], [1], [0, 0, 1, 1], [], []>} : vector<16x32xbf16>, vector<32x96xbf16>, vector<16x96xf32> -> vector<16x96xf32>
    %c0_3 = arith.constant 0 : index
    %c0_4 = arith.constant 0 : index
    %c0_5 = arith.constant 0 : index
    %3 = vector.load %arg2[%c0_3, %c0_4, %c0_5] : memref<4x8x32xbf16, #tpu.memory_space<vmem>>, vector<4x8x32xbf16>
    %cst_6 = arith.constant 0.000000e+00 : f32
    %4 = vector.broadcast %cst_6 : f32 to vector<16x32xf32>
    %5 = vector.extract_strided_slice %2 {offsets = [0, 0], sizes = [16, 8], strides = [1, 1]} : vector<16x96xf32> to vector<16x8xf32>
    %6 = vector.extract_strided_slice %2 {offsets = [0, 32], sizes = [16, 8], strides = [1, 1]} : vector<16x96xf32> to vector<16x8xf32>
    %7 = vector.extract_strided_slice %2 {offsets = [0, 64], sizes = [16, 8], strides = [1, 1]} : vector<16x96xf32> to vector<16x8xf32>
    %8 = vector.shape_cast %5 : vector<16x8xf32> to vector<2x8x8xf32>
    %9 = arith.truncf %8 : vector<2x8x8xf32> to vector<2x8x8xbf16>
    %10 = vector.shape_cast %6 : vector<16x8xf32> to vector<2x8x8xf32>
    %11 = arith.truncf %10 : vector<2x8x8xf32> to vector<2x8x8xbf16>
    %12 = vector.shape_cast %7 : vector<16x8xf32> to vector<2x8x8xf32>
    %13 = arith.truncf %12 : vector<2x8x8xf32> to vector<2x8x8xbf16>
    "tpu.trace_start"() <{level = 10 : i32, message = "bld,bmd->blm"}> : () -> ()
    %cst_7 = arith.constant dense<0.000000e+00> : vector<2x8x8xf32>
    %14 = tpu.matmul %9, %11, %cst_7 {dimension_numbers = #tpu.dot_dimension_numbers<[2], [2], [1], [1], [0, 0, 0, 1, 1, 1], [0], [0]>} : vector<2x8x8xbf16>, vector<2x8x8xbf16>, vector<2x8x8xf32> -> vector<2x8x8xf32>
    "tpu.trace_stop"() : () -> ()
    %cst_8 = arith.constant dense<0xFF800000> : vector<2x8xf32>
    %15 = vector.multi_reduction <maximumf>, %14, %cst_8 [2] : vector<2x8x8xf32> to vector<2x8xf32>
    %16 = vector.shape_cast %15 : vector<2x8xf32> to vector<2x8x1xf32>
    %17 = vector.broadcast %16 : vector<2x8x1xf32> to vector<2x8x8xf32>
    %18 = arith.subf %14, %17 : vector<2x8x8xf32>
    %19 = math.exp %18 : vector<2x8x8xf32>
    %cst_9 = arith.constant dense<0.000000e+00> : vector<2x8xf32>
    %20 = vector.multi_reduction <add>, %19, %cst_9 [2] : vector<2x8x8xf32> to vector<2x8xf32>
    %21 = vector.shape_cast %20 : vector<2x8xf32> to vector<2x8x1xf32>
    %22 = vector.broadcast %21 : vector<2x8x1xf32> to vector<2x8x8xf32>
    %23 = arith.divf %19, %22 : vector<2x8x8xf32>
    %24 = arith.truncf %23 : vector<2x8x8xf32> to vector<2x8x8xbf16>
    "tpu.trace_start"() <{level = 10 : i32, message = "blm,bmd->bld"}> : () -> ()
    %cst_10 = arith.constant dense<0.000000e+00> : vector<2x8x8xf32>
    %25 = tpu.matmul %24, %13, %cst_10 {dimension_numbers = #tpu.dot_dimension_numbers<[2], [1], [1], [2], [0, 0, 0, 1, 1, 2], [0], [0]>} : vector<2x8x8xbf16>, vector<2x8x8xbf16>, vector<2x8x8xf32> -> vector<2x8x8xf32>
    "tpu.trace_stop"() : () -> ()
    %26 = vector.shape_cast %25 : vector<2x8x8xf32> to vector<16x8xf32>
    %27 = arith.truncf %26 : vector<16x8xf32> to vector<16x8xbf16>
    %28 = vector.extract_strided_slice %3 {offsets = [0, 0, 0], sizes = [1, 8, 32], strides = [1, 1, 1]} : vector<4x8x32xbf16> to vector<1x8x32xbf16>
    %29 = vector.shape_cast %28 : vector<1x8x32xbf16> to vector<8x32xbf16>
    %cst_11 = arith.constant dense<0.000000e+00> : vector<16x32xf32>
    %30 = tpu.matmul %27, %29, %cst_11 {dimension_numbers = #tpu.dot_dimension_numbers<[1], [0], [0], [1], [0, 0, 1, 1], [], []>} : vector<16x8xbf16>, vector<8x32xbf16>, vector<16x32xf32> -> vector<16x32xf32>
    %31 = arith.addf %4, %30 : vector<16x32xf32>
    %32 = vector.extract_strided_slice %2 {offsets = [0, 8], sizes = [16, 8], strides = [1, 1]} : vector<16x96xf32> to vector<16x8xf32>
    %33 = vector.extract_strided_slice %2 {offsets = [0, 40], sizes = [16, 8], strides = [1, 1]} : vector<16x96xf32> to vector<16x8xf32>
    %34 = vector.extract_strided_slice %2 {offsets = [0, 72], sizes = [16, 8], strides = [1, 1]} : vector<16x96xf32> to vector<16x8xf32>
    %35 = vector.shape_cast %32 : vector<16x8xf32> to vector<2x8x8xf32>
    %36 = arith.truncf %35 : vector<2x8x8xf32> to vector<2x8x8xbf16>
    %37 = vector.shape_cast %33 : vector<16x8xf32> to vector<2x8x8xf32>
    %38 = arith.truncf %37 : vector<2x8x8xf32> to vector<2x8x8xbf16>
    %39 = vector.shape_cast %34 : vector<16x8xf32> to vector<2x8x8xf32>
    %40 = arith.truncf %39 : vector<2x8x8xf32> to vector<2x8x8xbf16>
    "tpu.trace_start"() <{level = 10 : i32, message = "bld,bmd->blm"}> : () -> ()
    %cst_12 = arith.constant dense<0.000000e+00> : vector<2x8x8xf32>
    %41 = tpu.matmul %36, %38, %cst_12 {dimension_numbers = #tpu.dot_dimension_numbers<[2], [2], [1], [1], [0, 0, 0, 1, 1, 1], [0], [0]>} : vector<2x8x8xbf16>, vector<2x8x8xbf16>, vector<2x8x8xf32> -> vector<2x8x8xf32>
    "tpu.trace_stop"() : () -> ()
    %cst_13 = arith.constant dense<0xFF800000> : vector<2x8xf32>
    %42 = vector.multi_reduction <maximumf>, %41, %cst_13 [2] : vector<2x8x8xf32> to vector<2x8xf32>
    %43 = vector.shape_cast %42 : vector<2x8xf32> to vector<2x8x1xf32>
    %44 = vector.broadcast %43 : vector<2x8x1xf32> to vector<2x8x8xf32>
    %45 = arith.subf %41, %44 : vector<2x8x8xf32>
    %46 = math.exp %45 : vector<2x8x8xf32>
    %cst_14 = arith.constant dense<0.000000e+00> : vector<2x8xf32>
    %47 = vector.multi_reduction <add>, %46, %cst_14 [2] : vector<2x8x8xf32> to vector<2x8xf32>
    %48 = vector.shape_cast %47 : vector<2x8xf32> to vector<2x8x1xf32>
    %49 = vector.broadcast %48 : vector<2x8x1xf32> to vector<2x8x8xf32>
    %50 = arith.divf %46, %49 : vector<2x8x8xf32>
    %51 = arith.truncf %50 : vector<2x8x8xf32> to vector<2x8x8xbf16>
    "tpu.trace_start"() <{level = 10 : i32, message = "blm,bmd->bld"}> : () -> ()
    %cst_15 = arith.constant dense<0.000000e+00> : vector<2x8x8xf32>
    %52 = tpu.matmul %51, %40, %cst_15 {dimension_numbers = #tpu.dot_dimension_numbers<[2], [1], [1], [2], [0, 0, 0, 1, 1, 2], [0], [0]>} : vector<2x8x8xbf16>, vector<2x8x8xbf16>, vector<2x8x8xf32> -> vector<2x8x8xf32>
    "tpu.trace_stop"() : () -> ()
    %53 = vector.shape_cast %52 : vector<2x8x8xf32> to vector<16x8xf32>
    %54 = arith.truncf %53 : vector<16x8xf32> to vector<16x8xbf16>
    %55 = vector.extract_strided_slice %3 {offsets = [1, 0, 0], sizes = [1, 8, 32], strides = [1, 1, 1]} : vector<4x8x32xbf16> to vector<1x8x32xbf16>
    %56 = vector.shape_cast %55 : vector<1x8x32xbf16> to vector<8x32xbf16>
    %cst_16 = arith.constant dense<0.000000e+00> : vector<16x32xf32>
    %57 = tpu.matmul %54, %56, %cst_16 {dimension_numbers = #tpu.dot_dimension_numbers<[1], [0], [0], [1], [0, 0, 1, 1], [], []>} : vector<16x8xbf16>, vector<8x32xbf16>, vector<16x32xf32> -> vector<16x32xf32>
    %58 = arith.addf %31, %57 : vector<16x32xf32>
    %59 = vector.extract_strided_slice %2 {offsets = [0, 16], sizes = [16, 8], strides = [1, 1]} : vector<16x96xf32> to vector<16x8xf32>
    %60 = vector.extract_strided_slice %2 {offsets = [0, 48], sizes = [16, 8], strides = [1, 1]} : vector<16x96xf32> to vector<16x8xf32>
    %61 = vector.extract_strided_slice %2 {offsets = [0, 80], sizes = [16, 8], strides = [1, 1]} : vector<16x96xf32> to vector<16x8xf32>
    %62 = vector.shape_cast %59 : vector<16x8xf32> to vector<2x8x8xf32>
    %63 = arith.truncf %62 : vector<2x8x8xf32> to vector<2x8x8xbf16>
    %64 = vector.shape_cast %60 : vector<16x8xf32> to vector<2x8x8xf32>
    %65 = arith.truncf %64 : vector<2x8x8xf32> to vector<2x8x8xbf16>
    %66 = vector.shape_cast %61 : vector<16x8xf32> to vector<2x8x8xf32>
    %67 = arith.truncf %66 : vector<2x8x8xf32> to vector<2x8x8xbf16>
    "tpu.trace_start"() <{level = 10 : i32, message = "bld,bmd->blm"}> : () -> ()
    %cst_17 = arith.constant dense<0.000000e+00> : vector<2x8x8xf32>
    %68 = tpu.matmul %63, %65, %cst_17 {dimension_numbers = #tpu.dot_dimension_numbers<[2], [2], [1], [1], [0, 0, 0, 1, 1, 1], [0], [0]>} : vector<2x8x8xbf16>, vector<2x8x8xbf16>, vector<2x8x8xf32> -> vector<2x8x8xf32>
    "tpu.trace_stop"() : () -> ()
    %cst_18 = arith.constant dense<0xFF800000> : vector<2x8xf32>
    %69 = vector.multi_reduction <maximumf>, %68, %cst_18 [2] : vector<2x8x8xf32> to vector<2x8xf32>
    %70 = vector.shape_cast %69 : vector<2x8xf32> to vector<2x8x1xf32>
    %71 = vector.broadcast %70 : vector<2x8x1xf32> to vector<2x8x8xf32>
    %72 = arith.subf %68, %71 : vector<2x8x8xf32>
    %73 = math.exp %72 : vector<2x8x8xf32>
    %cst_19 = arith.constant dense<0.000000e+00> : vector<2x8xf32>
    %74 = vector.multi_reduction <add>, %73, %cst_19 [2] : vector<2x8x8xf32> to vector<2x8xf32>
    %75 = vector.shape_cast %74 : vector<2x8xf32> to vector<2x8x1xf32>
    %76 = vector.broadcast %75 : vector<2x8x1xf32> to vector<2x8x8xf32>
    %77 = arith.divf %73, %76 : vector<2x8x8xf32>
    %78 = arith.truncf %77 : vector<2x8x8xf32> to vector<2x8x8xbf16>
    "tpu.trace_start"() <{level = 10 : i32, message = "blm,bmd->bld"}> : () -> ()
    %cst_20 = arith.constant dense<0.000000e+00> : vector<2x8x8xf32>
    %79 = tpu.matmul %78, %67, %cst_20 {dimension_numbers = #tpu.dot_dimension_numbers<[2], [1], [1], [2], [0, 0, 0, 1, 1, 2], [0], [0]>} : vector<2x8x8xbf16>, vector<2x8x8xbf16>, vector<2x8x8xf32> -> vector<2x8x8xf32>
    "tpu.trace_stop"() : () -> ()
    %80 = vector.shape_cast %79 : vector<2x8x8xf32> to vector<16x8xf32>
    %81 = arith.truncf %80 : vector<16x8xf32> to vector<16x8xbf16>
    %82 = vector.extract_strided_slice %3 {offsets = [2, 0, 0], sizes = [1, 8, 32], strides = [1, 1, 1]} : vector<4x8x32xbf16> to vector<1x8x32xbf16>
    %83 = vector.shape_cast %82 : vector<1x8x32xbf16> to vector<8x32xbf16>
    %cst_21 = arith.constant dense<0.000000e+00> : vector<16x32xf32>
    %84 = tpu.matmul %81, %83, %cst_21 {dimension_numbers = #tpu.dot_dimension_numbers<[1], [0], [0], [1], [0, 0, 1, 1], [], []>} : vector<16x8xbf16>, vector<8x32xbf16>, vector<16x32xf32> -> vector<16x32xf32>
    %85 = arith.addf %58, %84 : vector<16x32xf32>
    %86 = vector.extract_strided_slice %2 {offsets = [0, 24], sizes = [16, 8], strides = [1, 1]} : vector<16x96xf32> to vector<16x8xf32>
    %87 = vector.extract_strided_slice %2 {offsets = [0, 56], sizes = [16, 8], strides = [1, 1]} : vector<16x96xf32> to vector<16x8xf32>
    %88 = vector.extract_strided_slice %2 {offsets = [0, 88], sizes = [16, 8], strides = [1, 1]} : vector<16x96xf32> to vector<16x8xf32>
    %89 = vector.shape_cast %86 : vector<16x8xf32> to vector<2x8x8xf32>
    %90 = arith.truncf %89 : vector<2x8x8xf32> to vector<2x8x8xbf16>
    %91 = vector.shape_cast %87 : vector<16x8xf32> to vector<2x8x8xf32>
    %92 = arith.truncf %91 : vector<2x8x8xf32> to vector<2x8x8xbf16>
    %93 = vector.shape_cast %88 : vector<16x8xf32> to vector<2x8x8xf32>
    %94 = arith.truncf %93 : vector<2x8x8xf32> to vector<2x8x8xbf16>
    "tpu.trace_start"() <{level = 10 : i32, message = "bld,bmd->blm"}> : () -> ()
    %cst_22 = arith.constant dense<0.000000e+00> : vector<2x8x8xf32>
    %95 = tpu.matmul %90, %92, %cst_22 {dimension_numbers = #tpu.dot_dimension_numbers<[2], [2], [1], [1], [0, 0, 0, 1, 1, 1], [0], [0]>} : vector<2x8x8xbf16>, vector<2x8x8xbf16>, vector<2x8x8xf32> -> vector<2x8x8xf32>
    "tpu.trace_stop"() : () -> ()
    %cst_23 = arith.constant dense<0xFF800000> : vector<2x8xf32>
    %96 = vector.multi_reduction <maximumf>, %95, %cst_23 [2] : vector<2x8x8xf32> to vector<2x8xf32>
    %97 = vector.shape_cast %96 : vector<2x8xf32> to vector<2x8x1xf32>
    %98 = vector.broadcast %97 : vector<2x8x1xf32> to vector<2x8x8xf32>
    %99 = arith.subf %95, %98 : vector<2x8x8xf32>
    %100 = math.exp %99 : vector<2x8x8xf32>
    %cst_24 = arith.constant dense<0.000000e+00> : vector<2x8xf32>
    %101 = vector.multi_reduction <add>, %100, %cst_24 [2] : vector<2x8x8xf32> to vector<2x8xf32>
    %102 = vector.shape_cast %101 : vector<2x8xf32> to vector<2x8x1xf32>
    %103 = vector.broadcast %102 : vector<2x8x1xf32> to vector<2x8x8xf32>
    %104 = arith.divf %100, %103 : vector<2x8x8xf32>
    %105 = arith.truncf %104 : vector<2x8x8xf32> to vector<2x8x8xbf16>
    "tpu.trace_start"() <{level = 10 : i32, message = "blm,bmd->bld"}> : () -> ()
    %cst_25 = arith.constant dense<0.000000e+00> : vector<2x8x8xf32>
    %106 = tpu.matmul %105, %94, %cst_25 {dimension_numbers = #tpu.dot_dimension_numbers<[2], [1], [1], [2], [0, 0, 0, 1, 1, 2], [0], [0]>} : vector<2x8x8xbf16>, vector<2x8x8xbf16>, vector<2x8x8xf32> -> vector<2x8x8xf32>
    "tpu.trace_stop"() : () -> ()
    %107 = vector.shape_cast %106 : vector<2x8x8xf32> to vector<16x8xf32>
    %108 = arith.truncf %107 : vector<16x8xf32> to vector<16x8xbf16>
    %109 = vector.extract_strided_slice %3 {offsets = [3, 0, 0], sizes = [1, 8, 32], strides = [1, 1, 1]} : vector<4x8x32xbf16> to vector<1x8x32xbf16>
    %110 = vector.shape_cast %109 : vector<1x8x32xbf16> to vector<8x32xbf16>
    %cst_26 = arith.constant dense<0.000000e+00> : vector<16x32xf32>
    %111 = tpu.matmul %108, %110, %cst_26 {dimension_numbers = #tpu.dot_dimension_numbers<[1], [0], [0], [1], [0, 0, 1, 1], [], []>} : vector<16x8xbf16>, vector<8x32xbf16>, vector<16x32xf32> -> vector<16x32xf32>
    %112 = arith.addf %85, %111 : vector<16x32xf32>
    %c0_27 = arith.constant 0 : index
    %c0_28 = arith.constant 0 : index
    %113 = vector.load %arg3[%c0_27, %c0_28] : memref<1x32xf32, #tpu.memory_space<vmem>>, vector<1x32xf32>
    %114 = vector.broadcast %113 : vector<1x32xf32> to vector<16x32xf32>
    %115 = arith.addf %112, %114 : vector<16x32xf32>
    %c0_29 = arith.constant 0 : index
    %c0_30 = arith.constant 0 : index
    %116 = vector.load %arg4[%c0_29, %c0_30] : memref<16x32xf32, #tpu.memory_space<vmem>>, vector<16x32xf32>
    tpu.vector_store %arg4[%c0_29, %c0_30], %115 {strides = array<i32>} : memref<16x32xf32, #tpu.memory_space<vmem>>, vector<16x32xf32>,
    return
  }
}

</mosaic_0001>

<llo_original>
// kernel: tpu_custom_call.1
$region0: #{tpu_custom_call.1}
  #allocation0 [shape = 'u32[]', space=smem, size = 0x4, offset = 0x4, fixed_abs, tag = 'smem constant byte address 0x4 - core index']
  #allocation1 [shape = 'u32[72,128]{1,0:T(1,128)}', space=vmem, size = 0x9000, scoped, tag = 'internal scratch']
  %s0 = inlined_call_operand.hbm [shape: bf16[16,32], index: 0, kind: input, shape index: {}]
  %s1 = inlined_call_operand.hbm [shape: bf16[32,96], index: 1, kind: input, shape index: {}]
  %s2 = inlined_call_operand.hbm [shape: bf16[4,8,32], index: 2, kind: input, shape index: {}]
  %s3 = inlined_call_operand.vmem [shape: f32[1,32], index: 3, kind: input, shape index: {}]
  %s4 = inlined_call_operand.hbm [shape: f32[16,32], index: 4, kind: output, shape index: {}]
  %s5 = sld [smem:[#allocation0]]
  $region38: #{tpu_custom_call.1} parent=0
    _
  %s7 = ssub.s32 1, %s5
  %s8 = scalar_select 0, %s7, %s5
  $region1: #{tpu_custom_call.1} parent=0
    #allocation2 [shape = 'u8[4096]{0}', space=vmem, size = 0x1000, scoped, tag = 'input window, operand 0, single buffered']
    #allocation3 [shape = 's32[1]{0}', space=sflag, size = 0x4, scoped, tag = 'scoped memory for tpu_custom_call.1']
    #allocation4 [shape = 's32[1]{0}', space=sflag, size = 0x4, scoped, tag = 'scoped memory for tpu_custom_call.1']
    #allocation5 [shape = 'u8[8192]{0}', space=vmem, size = 0x2000, scoped, tag = 'input window, operand 1, single buffered']
    #allocation6 [shape = 's32[1]{0}', space=sflag, size = 0x4, scoped, tag = 'scoped memory for tpu_custom_call.1']
    #allocation7 [shape = 'u8[8192]{0}', space=vmem, size = 0x2000, scoped, tag = 'input window, operand 2, single buffered']
    #allocation8 [shape = 'u8[8192]{0}', space=vmem, size = 0x2000, scoped, tag = 'output window, operand 0, single buffered']
    %9 = vsyncpa [#allocation3], 0
    %10 = vsyncpa [#allocation6], 0
    %11 = vsyncpa [#allocation4], 0
    // Predicated region
    $region2: #{tpu_custom_call.1} parent=1 // pred_check
      _
    $region3: #{tpu_custom_call.1} parent=1 // pred_check_branch
      %13 = sbr.rel (0) target = $region5
    $region4: #{tpu_custom_call.1} parent=1 // pred_region
      %15 = vsyncadd [#allocation3], 0
      %s16 = sshll.u32 %s0, 4
      %s17 = int_to_ptr.hbm [resolvable:$true] %s16
      %s18 = sshll.u32 [#allocation2], 4
      %s19 = int_to_ptr.vmem [resolvable:$true] %s18
      %24 = dma.hbm_to_vmem [thread:$0]  %s17, 128, %s19, [#allocation3], 64, 64, 4
    $region5: #{tpu_custom_call.1} parent=1 // pred_fallthru
      _
    // Predicated region
    $region6: #{tpu_custom_call.1} parent=1 // pred_check
      _
    $region7: #{tpu_custom_call.1} parent=1 // pred_check_branch
      %26 = sbr.rel (0) target = $region9
    $region8: #{tpu_custom_call.1} parent=1 // pred_region
      %28 = vsyncadd [#allocation6], 0
      %s29 = sshll.u32 %s1, 4
      %s30 = int_to_ptr.hbm [resolvable:$true] %s29
      %s31 = sshll.u32 [#allocation5], 4
      %s32 = int_to_ptr.vmem [resolvable:$true] %s31
      %37 = dma.hbm_to_vmem [thread:$0]  %s30, 256, %s32, [#allocation6], 64, 64, 4
    $region9: #{tpu_custom_call.1} parent=1 // pred_fallthru
      _
    // Predicated region
    $region10: #{tpu_custom_call.1} parent=1 // pred_check
      _
    $region11: #{tpu_custom_call.1} parent=1 // pred_check_branch
      %39 = sbr.rel (0) target = $region13
    $region12: #{tpu_custom_call.1} parent=1 // pred_region
      %41 = vsyncadd [#allocation6], 0
      %s42 = sshll.u32 %s2, 4
      %s43 = int_to_ptr.hbm [resolvable:$true] %s42
      %s44 = sshll.u32 [#allocation7], 4
      %s45 = int_to_ptr.vmem [resolvable:$true] %s44
      %50 = dma.hbm_to_vmem [thread:$0]  %s43, 256, %s45, [#allocation6], 64, 64, 4
    $region13: #{tpu_custom_call.1} parent=1 // pred_fallthru
      _
    // Predicated region
    $region14: #{tpu_custom_call.1} parent=1 // pred_check
      _
    $region15: #{tpu_custom_call.1} parent=1 // pred_check_branch
      %52 = sbr.rel (0) target = $region17
    $region16: #{tpu_custom_call.1} parent=1 // pred_region
      _
    $region17: #{tpu_custom_call.1} parent=1 // pred_fallthru
      _
    // Predicated region
    $region18: #{tpu_custom_call.1} parent=1 // pred_check
      _
    $region19: #{tpu_custom_call.1} parent=1 // pred_check_branch
      %54 = sbr.rel (0) target = $region21
    $region20: #{tpu_custom_call.1} parent=1 // pred_region
      %56 = dma.done [#allocation3], 128
    $region21: #{tpu_custom_call.1} parent=1 // pred_fallthru
      _
    // Predicated region
    $region22: #{tpu_custom_call.1} parent=1 // pred_check
      _
    $region23: #{tpu_custom_call.1} parent=1 // pred_check_branch
      %58 = sbr.rel (0) target = $region25
    $region24: #{tpu_custom_call.1} parent=1 // pred_region
      %60 = dma.done [#allocation6], 256
    $region25: #{tpu_custom_call.1} parent=1 // pred_fallthru
      _
    // Predicated region
    $region26: #{tpu_custom_call.1} parent=1 // pred_check
      _
    $region27: #{tpu_custom_call.1} parent=1 // pred_check_branch
      %62 = sbr.rel (0) target = $region29
    $region28: #{tpu_custom_call.1} parent=1 // pred_region
      %64 = dma.done [#allocation6], 256
    $region29: #{tpu_custom_call.1} parent=1 // pred_fallthru
      _
    %v66 = vld [vmem:[#allocation2] sm:$0xf]
    %v67 = vld [vmem:[#allocation2 + $0x4] sm:$0xf]
    %v68 = vld [vmem:[#allocation5] sm:$0xf]
    %v69 = vld [vmem:[#allocation5 + $0x4] sm:$0xf]
    %v70 = vld [vmem:[#allocation5 + $0x8] sm:$0xf]
    %v71 = vld [vmem:[#allocation5 + $0xc] sm:$0xf]
    %v74 = vunpack.c.l.b16 %v66
    %v75 = vunpack.c.l.b16 %v67
    %v76 = vpack.c.b16 %v75, %v74
    %v81 = vunpack.c.l.b16 %v68
    %v82 = vunpack.c.l.b16 %v69
    %v83 = vunpack.c.l.b16 %v70
    %v84 = vunpack.c.l.b16 %v71
    %v85 = vpack.c.b16 %v82, %v81
    %v86 = vpack.c.b16 %v84, %v83
    %vm89 = vcmask 261120
    %v91 = vsel %vm89, %v76, 0
    %93 = vmatpush.bf16.msra.mxu0 0
    %94 = vmatpush.bf16.msra.mxu0 0
    %95 = vmatpush.bf16.msra.mxu0 0
    %96 = vmatpush.bf16.msra.mxu0 0
    %97 = vmatpush.bf16.msra.mxu0 0
    %98 = vmatpush.bf16.msra.mxu0 0
    %99 = vmatpush.bf16.msra.mxu0 %v86
    %100 = vmatpush.bf16.msra.mxu0 %v85
    %101 = vmatmul.bf16.gmra.mxu0 %v91
    %v102 = vpop.f32.mrf.mxu0
    %v103 = vadd.f32 0.0, %v102
    %v104 = vpop.f32.mrf.mxu0
    %v105 = vadd.f32 0.0, %v104
    %106 = vdwg.mxu0
    %v107 = vld [vmem:[#allocation7] sm:$0xf]
    %v108 = vld [vmem:[#allocation7 + $0x4] sm:$0xf]
    %v109 = vld [vmem:[#allocation7 + $0x8] sm:$0xf]
    %v110 = vld [vmem:[#allocation7 + $0xc] sm:$0xf]
    %v111 = vpack.c.bf16 %v103, %v103
    %v112 = vpack.c.bf16 %v105, %v105
    %v114 = vunpack.c.l.b16 %v111
    %v115 = vpack.c.b16 %v114, %v114
    %116 = vrot.lane.b32.xlu0 %v115, 96
    %v117 = vpop.permute.xlu0 %116
    %vm118 = vcmask 64512
    %v120 = vsel %vm118, %v111, 0
    %v123 = vsel %vm118, %v117, 0
    %125 = vmatpush.bf16.xpose.msra.mxu0 0
    %126 = vmatpush.bf16.xpose.msra.mxu0 0
    %127 = vmatpush.bf16.xpose.msra.mxu0 0
    %128 = vmatpush.bf16.xpose.msra.mxu0 0
    %129 = vmatpush.bf16.xpose.msra.mxu0 0
    %130 = vmatpush.bf16.xpose.msra.mxu0 0
    %131 = vmatpush.bf16.xpose.msra.mxu0 0
    %132 = vmatpush.bf16.xpose.msra.mxu0 %v123
    %133 = vmatmul.bf16.gmra.mxu0 %v120
    %v134 = vpop.f32.mrf.mxu0
    %v135 = vadd.f32 0.0, %v134
    %v136 = vpop.f32.mrf.mxu0
    %137 = vdwg.mxu0
    %v139 = vunpack.c.l.b16 %v112
    %v140 = vpack.c.b16 %v139, %v139
    %141 = vrot.lane.b32.xlu0 %v140, 96
    %v142 = vpop.permute.xlu0 %141
    %v144 = vsel %vm118, %v112, 0
    %v147 = vsel %vm118, %v142, 0
    %149 = vmatpush.bf16.xpose.msra.mxu0 0
    %150 = vmatpush.bf16.xpose.msra.mxu0 0
    %151 = vmatpush.bf16.xpose.msra.mxu0 0
    %152 = vmatpush.bf16.xpose.msra.mxu0 0
    %153 = vmatpush.bf16.xpose.msra.mxu0 0
    %154 = vmatpush.bf16.xpose.msra.mxu0 0
    %155 = vmatpush.bf16.xpose.msra.mxu0 0
    %156 = vmatpush.bf16.xpose.msra.mxu0 %v147
    %157 = vmatmul.bf16.gmra.mxu0 %v144
    %v158 = vpop.f32.mrf.mxu0
    %v159 = vadd.f32 0.0, %v158
    %v160 = vpop.f32.mrf.mxu0
    %161 = vdwg.mxu0
    %v162 = vsel %vm118, %v135, -inf
    %163 = vmax.xlane.f32.xlu0 %v162
    %v164 = vpop.xlane.xlu0 %163
    %v165 = vsel %vm118, %v159, -inf
    %166 = vmax.xlane.f32.xlu0 %v165
    %v167 = vpop.xlane.xlu0 %166
    %v168 = vsub.f32 %v135, %v164
    %v169 = vsub.f32 %v159, %v167
    %v170 = vmul.f32 %v168, 1.442695
    %v171 = vpow.pop %v170
    %v172 = vmul.f32 %v169, 1.442695
    %v173 = vpow.pop %v172
    %v174 = vsel %vm118, %v171, 0.0
    %175 = vadd.xlane.f32.xlu0 %v174
    %v176 = vpop.xlane.xlu0 %175
    %v177 = vsel %vm118, %v173, 0.0
    %178 = vadd.xlane.f32.xlu0 %v177
    %v179 = vpop.xlane.xlu0 %178
    %v180 = vrcp.pop %v176
    %v181 = vmul.f32 %v176, %v180
    %v182 = vsub.f32 1.0, %v181
    %v183 = vmul.f32 %v180, %v182
    %v184 = vadd.f32 %v180, %v183
    %vm185 = vweird.f32 %v176
    %vm186 = vweird.f32 %v180
    %vm187 = vmor %vm185, %vm186
    %v188 = vsel %vm187, %v180, %v184
    %v189 = vand.u32 2147483647, %v176
    %vm190 = vcmp.eq.f32.partialorder %v189, 8.507059e+37
    %v191 = vand.u32 %v176, 2147483648
    %v192 = vor.u32 1.1754944e-38, %v191
    %v193 = vsel %vm190, %v192, %v188
    %v194 = vmul.f32 %v171, %v193
    %v195 = vrcp.pop %v179
    %v196 = vmul.f32 %v179, %v195
    %v197 = vsub.f32 1.0, %v196
    %v198 = vmul.f32 %v195, %v197
    %v199 = vadd.f32 %v195, %v198
    %vm200 = vweird.f32 %v179
    %vm201 = vweird.f32 %v195
    %vm202 = vmor %vm200, %vm201
    %v203 = vsel %vm202, %v195, %v199
    %v204 = vand.u32 2147483647, %v179
    %vm205 = vcmp.eq.f32.partialorder %v204, 8.507059e+37
    %v206 = vand.u32 %v179, 2147483648
    %v207 = vor.u32 1.1754944e-38, %v206
    %v208 = vsel %vm205, %v207, %v203
    %v209 = vmul.f32 %v173, %v208
    %v210 = vpack.c.bf16 %v194, %v194
    %v211 = vpack.c.bf16 %v209, %v209
    %212 = vrot.lane.b32.xlu0 %v115, 64
    %v213 = vpop.permute.xlu0 %212
    %v215 = vsel %vm118, %v210, 0
    %vm217 = vcmask 1043456
    %v219 = vsel %vm217, %v213, 0
    %221 = vmatpush.bf16.msra.mxu0 0
    %222 = vmatpush.bf16.msra.mxu0 0
    %223 = vmatpush.bf16.msra.mxu0 0
    %224 = vmatpush.bf16.msra.mxu0 0
    %225 = vmatpush.bf16.msra.mxu0 0
    %226 = vmatpush.bf16.msra.mxu0 0
    %227 = vmatpush.bf16.msra.mxu0 0
    %228 = vmatpush.bf16.msra.mxu0 %v219
    %229 = vmatmul.bf16.gmra.mxu0 %v215
    %v230 = vpop.f32.mrf.mxu0
    %v231 = vadd.f32 0.0, %v230
    %v232 = vpop.f32.mrf.mxu0
    %233 = vdwg.mxu0
    %234 = vrot.lane.b32.xlu0 %v140, 64
    %v235 = vpop.permute.xlu0 %234
    %v237 = vsel %vm118, %v211, 0
    %v240 = vsel %vm217, %v235, 0
    %242 = vmatpush.bf16.msra.mxu0 0
    %243 = vmatpush.bf16.msra.mxu0 0
    %244 = vmatpush.bf16.msra.mxu0 0
    %245 = vmatpush.bf16.msra.mxu0 0
    %246 = vmatpush.bf16.msra.mxu0 0
    %247 = vmatpush.bf16.msra.mxu0 0
    %248 = vmatpush.bf16.msra.mxu0 0
    %249 = vmatpush.bf16.msra.mxu0 %v240
    %250 = vmatmul.bf16.gmra.mxu0 %v237
    %v251 = vpop.f32.mrf.mxu0
    %v252 = vadd.f32 0.0, %v251
    %v253 = vpop.f32.mrf.mxu0
    %254 = vdwg.mxu0
    %v255 = vpack.c.bf16 %v252, %v231
    %256 = vrot.lane.b32.xlu0 %v115, 120
    %v257 = vpop.permute.xlu0 %256
    %258 = vrot.lane.b32.xlu0 %v115, 88
    %v259 = vpop.permute.xlu0 %258
    %v261 = vsel %vm118, %v257, 0
    %v264 = vsel %vm118, %v259, 0
    %266 = vmatpush.bf16.xpose.msra.mxu0 0
    %267 = vmatpush.bf16.xpose.msra.mxu0 0
    %268 = vmatpush.bf16.xpose.msra.mxu0 0
    %269 = vmatpush.bf16.xpose.msra.mxu0 0
    %270 = vmatpush.bf16.xpose.msra.mxu0 0
    %271 = vmatpush.bf16.xpose.msra.mxu0 0
    %272 = vmatpush.bf16.xpose.msra.mxu0 0
    %273 = vmatpush.bf16.xpose.msra.mxu0 %v264
    %274 = vmatmul.bf16.gmra.mxu0 %v261
    %v275 = vpop.f32.mrf.mxu0
    %v276 = vadd.f32 0.0, %v275
    %v277 = vpop.f32.mrf.mxu0
    %278 = vdwg.mxu0
    %279 = vrot.lane.b32.xlu0 %v140, 120
    %v280 = vpop.permute.xlu0 %279
    %281 = vrot.lane.b32.xlu0 %v140, 88
    %v282 = vpop.permute.xlu0 %281
    %v284 = vsel %vm118, %v280, 0
    %v287 = vsel %vm118, %v282, 0
    %289 = vmatpush.bf16.xpose.msra.mxu0 0
    %290 = vmatpush.bf16.xpose.msra.mxu0 0
    %291 = vmatpush.bf16.xpose.msra.mxu0 0
    %292 = vmatpush.bf16.xpose.msra.mxu0 0
    %293 = vmatpush.bf16.xpose.msra.mxu0 0
    %294 = vmatpush.bf16.xpose.msra.mxu0 0
    %295 = vmatpush.bf16.xpose.msra.mxu0 0
    %296 = vmatpush.bf16.xpose.msra.mxu0 %v287
    %297 = vmatmul.bf16.gmra.mxu0 %v284
    %v298 = vpop.f32.mrf.mxu0
    %v299 = vadd.f32 0.0, %v298
    %v300 = vpop.f32.mrf.mxu0
    %301 = vdwg.mxu0
    %v302 = vsel %vm118, %v276, -inf
    %303 = vmax.xlane.f32.xlu0 %v302
    %v304 = vpop.xlane.xlu0 %303
    %v305 = vsel %vm118, %v299, -inf
    %306 = vmax.xlane.f32.xlu0 %v305
    %v307 = vpop.xlane.xlu0 %306
    %v308 = vsub.f32 %v276, %v304
    %v309 = vsub.f32 %v299, %v307
    %v310 = vmul.f32 %v308, 1.442695
    %v311 = vpow.pop %v310
    %v312 = vmul.f32 %v309, 1.442695
    %v313 = vpow.pop %v312
    %v314 = vsel %vm118, %v311, 0.0
    %315 = vadd.xlane.f32.xlu0 %v314
    %v316 = vpop.xlane.xlu0 %315
    %v317 = vsel %vm118, %v313, 0.0
    %318 = vadd.xlane.f32.xlu0 %v317
    %v319 = vpop.xlane.xlu0 %318
    %v320 = vrcp.pop %v316
    %v321 = vmul.f32 %v316, %v320
    %v322 = vsub.f32 1.0, %v321
    %v323 = vmul.f32 %v320, %v322
    %v324 = vadd.f32 %v320, %v323
    %vm325 = vweird.f32 %v316
    %vm326 = vweird.f32 %v320
    %vm327 = vmor %vm325, %vm326
    %v328 = vsel %vm327, %v320, %v324
    %v329 = vand.u32 2147483647, %v316
    %vm330 = vcmp.eq.f32.partialorder %v329, 8.507059e+37
    %v331 = vand.u32 %v316, 2147483648
    %v332 = vor.u32 1.1754944e-38, %v331
    %v333 = vsel %vm330, %v332, %v328
    %v334 = vmul.f32 %v311, %v333
    %v335 = vrcp.pop %v319
    %v336 = vmul.f32 %v319, %v335
    %v337 = vsub.f32 1.0, %v336
    %v338 = vmul.f32 %v335, %v337
    %v339 = vadd.f32 %v335, %v338
    %vm340 = vweird.f32 %v319
    %vm341 = vweird.f32 %v335
    %vm342 = vmor %vm340, %vm341
    %v343 = vsel %vm342, %v335, %v339
    %v344 = vand.u32 2147483647, %v319
    %vm345 = vcmp.eq.f32.partialorder %v344, 8.507059e+37
    %v346 = vand.u32 %v319, 2147483648
    %v347 = vor.u32 1.1754944e-38, %v346
    %v348 = vsel %vm345, %v347, %v343
    %v349 = vmul.f32 %v313, %v348
    %v350 = vpack.c.bf16 %v334, %v334
    %v351 = vpack.c.bf16 %v349, %v349
    %352 = vrot.lane.b32.xlu0 %v115, 56
    %v353 = vpop.permute.xlu0 %352
    %v355 = vsel %vm118, %v350, 0
    %v358 = vsel %vm217, %v353, 0
    %360 = vmatpush.bf16.msra.mxu0 0
    %361 = vmatpush.bf16.msra.mxu0 0
    %362 = vmatpush.bf16.msra.mxu0 0
    %363 = vmatpush.bf16.msra.mxu0 0
    %364 = vmatpush.bf16.msra.mxu0 0
    %365 = vmatpush.bf16.msra.mxu0 0
    %366 = vmatpush.bf16.msra.mxu0 0
    %367 = vmatpush.bf16.msra.mxu0 %v358
    %368 = vmatmul.bf16.gmra.mxu0 %v355
    %v369 = vpop.f32.mrf.mxu0
    %v370 = vadd.f32 0.0, %v369
    %v371 = vpop.f32.mrf.mxu0
    %372 = vdwg.mxu0
    %373 = vrot.lane.b32.xlu0 %v140, 56
    %v374 = vpop.permute.xlu0 %373
    %v376 = vsel %vm118, %v351, 0
    %v379 = vsel %vm217, %v374, 0
    %381 = vmatpush.bf16.msra.mxu0 0
    %382 = vmatpush.bf16.msra.mxu0 0
    %383 = vmatpush.bf16.msra.mxu0 0
    %384 = vmatpush.bf16.msra.mxu0 0
    %385 = vmatpush.bf16.msra.mxu0 0
    %386 = vmatpush.bf16.msra.mxu0 0
    %387 = vmatpush.bf16.msra.mxu0 0
    %388 = vmatpush.bf16.msra.mxu0 %v379
    %389 = vmatmul.bf16.gmra.mxu0 %v376
    %v390 = vpop.f32.mrf.mxu0
    %v391 = vadd.f32 0.0, %v390
    %v392 = vpop.f32.mrf.mxu0
    %393 = vdwg.mxu0
    %v394 = vpack.c.bf16 %v391, %v370
    %v396 = vsel %vm118, %v394, 0
    %v399 = vsel %vm217, %v108, 0
    %401 = vmatpush.bf16.msra.mxu0 0
    %402 = vmatpush.bf16.msra.mxu0 0
    %403 = vmatpush.bf16.msra.mxu0 0
    %404 = vmatpush.bf16.msra.mxu0 0
    %405 = vmatpush.bf16.msra.mxu0 0
    %406 = vmatpush.bf16.msra.mxu0 0
    %407 = vmatpush.bf16.msra.mxu0 0
    %408 = vmatpush.bf16.msra.mxu0 %v399
    %409 = vmatmul.bf16.gmra.mxu0 %v396
    %v410 = vpop.f32.mrf.mxu0
    %v411 = vadd.f32 0.0, %v410
    %v412 = vpop.f32.mrf.mxu0
    %v413 = vadd.f32 0.0, %v412
    %414 = vdwg.mxu0
    %v416 = vsel %vm118, %v255, 0
    %v419 = vsel %vm217, %v107, 0
    %421 = vmatpush.bf16.msra.mxu0 0
    %422 = vmatpush.bf16.msra.mxu0 0
    %423 = vmatpush.bf16.msra.mxu0 0
    %424 = vmatpush.bf16.msra.mxu0 0
    %425 = vmatpush.bf16.msra.mxu0 0
    %426 = vmatpush.bf16.msra.mxu0 0
    %427 = vmatpush.bf16.msra.mxu0 0
    %428 = vmatpush.bf16.msra.mxu0 %v419
    %429 = vmatmul.bf16.gmra.mxu0 %v416
    %v430 = vpop.f32.mrf.mxu0
    %v431 = vadd.f32 %v411, %v430
    %v432 = vpop.f32.mrf.mxu0
    %v433 = vadd.f32 %v413, %v432
    %434 = vdwg.mxu0
    %435 = vrot.lane.b32.xlu0 %v115, 112
    %v436 = vpop.permute.xlu0 %435
    %437 = vrot.lane.b32.xlu0 %v115, 80
    %v438 = vpop.permute.xlu0 %437
    %v440 = vsel %vm118, %v436, 0
    %v443 = vsel %vm118, %v438, 0
    %445 = vmatpush.bf16.xpose.msra.mxu0 0
    %446 = vmatpush.bf16.xpose.msra.mxu0 0
    %447 = vmatpush.bf16.xpose.msra.mxu0 0
    %448 = vmatpush.bf16.xpose.msra.mxu0 0
    %449 = vmatpush.bf16.xpose.msra.mxu0 0
    %450 = vmatpush.bf16.xpose.msra.mxu0 0
    %451 = vmatpush.bf16.xpose.msra.mxu0 0
    %452 = vmatpush.bf16.xpose.msra.mxu0 %v443
    %453 = vmatmul.bf16.gmra.mxu0 %v440
    %v454 = vpop.f32.mrf.mxu0
    %v455 = vadd.f32 0.0, %v454
    %v456 = vpop.f32.mrf.mxu0
    %457 = vdwg.mxu0
    %458 = vrot.lane.b32.xlu0 %v140, 112
    %v459 = vpop.permute.xlu0 %458
    %460 = vrot.lane.b32.xlu0 %v140, 80
    %v461 = vpop.permute.xlu0 %460
    %v463 = vsel %vm118, %v459, 0
    %v466 = vsel %vm118, %v461, 0
    %468 = vmatpush.bf16.xpose.msra.mxu0 0
    %469 = vmatpush.bf16.xpose.msra.mxu0 0
    %470 = vmatpush.bf16.xpose.msra.mxu0 0
    %471 = vmatpush.bf16.xpose.msra.mxu0 0
    %472 = vmatpush.bf16.xpose.msra.mxu0 0
    %473 = vmatpush.bf16.xpose.msra.mxu0 0
    %474 = vmatpush.bf16.xpose.msra.mxu0 0
    %475 = vmatpush.bf16.xpose.msra.mxu0 %v466
    %476 = vmatmul.bf16.gmra.mxu0 %v463
    %v477 = vpop.f32.mrf.mxu0
    %v478 = vadd.f32 0.0, %v477
    %v479 = vpop.f32.mrf.mxu0
    %480 = vdwg.mxu0
    %v481 = vsel %vm118, %v455, -inf
    %482 = vmax.xlane.f32.xlu0 %v481
    %v483 = vpop.xlane.xlu0 %482
    %v484 = vsel %vm118, %v478, -inf
    %485 = vmax.xlane.f32.xlu0 %v484
    %v486 = vpop.xlane.xlu0 %485
    %v487 = vsub.f32 %v455, %v483
    %v488 = vsub.f32 %v478, %v486
    %v489 = vmul.f32 %v487, 1.442695
    %v490 = vpow.pop %v489
    %v491 = vmul.f32 %v488, 1.442695
    %v492 = vpow.pop %v491
    %v493 = vsel %vm118, %v490, 0.0
    %494 = vadd.xlane.f32.xlu0 %v493
    %v495 = vpop.xlane.xlu0 %494
    %v496 = vsel %vm118, %v492, 0.0
    %497 = vadd.xlane.f32.xlu0 %v496
    %v498 = vpop.xlane.xlu0 %497
    %v499 = vrcp.pop %v495
    %v500 = vmul.f32 %v495, %v499
    %v501 = vsub.f32 1.0, %v500
    %v502 = vmul.f32 %v499, %v501
    %v503 = vadd.f32 %v499, %v502
    %vm504 = vweird.f32 %v495
    %vm505 = vweird.f32 %v499
    %vm506 = vmor %vm504, %vm505
    %v507 = vsel %vm506, %v499, %v503
    %v508 = vand.u32 2147483647, %v495
    %vm509 = vcmp.eq.f32.partialorder %v508, 8.507059e+37
    %v510 = vand.u32 %v495, 2147483648
    %v511 = vor.u32 1.1754944e-38, %v510
    %v512 = vsel %vm509, %v511, %v507
    %v513 = vmul.f32 %v490, %v512
    %v514 = vrcp.pop %v498
    %v515 = vmul.f32 %v498, %v514
    %v516 = vsub.f32 1.0, %v515
    %v517 = vmul.f32 %v514, %v516
    %v518 = vadd.f32 %v514, %v517
    %vm519 = vweird.f32 %v498
    %vm520 = vweird.f32 %v514
    %vm521 = vmor %vm519, %vm520
    %v522 = vsel %vm521, %v514, %v518
    %v523 = vand.u32 2147483647, %v498
    %vm524 = vcmp.eq.f32.partialorder %v523, 8.507059e+37
    %v525 = vand.u32 %v498, 2147483648
    %v526 = vor.u32 1.1754944e-38, %v525
    %v527 = vsel %vm524, %v526, %v522
    %v528 = vmul.f32 %v492, %v527
    %v529 = vpack.c.bf16 %v513, %v513
    %v530 = vpack.c.bf16 %v528, %v528
    %531 = vrot.lane.b32.xlu0 %v115, 48
    %v532 = vpop.permute.xlu0 %531
    %v534 = vsel %vm118, %v529, 0
    %v537 = vsel %vm217, %v532, 0
    %539 = vmatpush.bf16.msra.mxu0 0
    %540 = vmatpush.bf16.msra.mxu0 0
    %541 = vmatpush.bf16.msra.mxu0 0
    %542 = vmatpush.bf16.msra.mxu0 0
    %543 = vmatpush.bf16.msra.mxu0 0
    %544 = vmatpush.bf16.msra.mxu0 0
    %545 = vmatpush.bf16.msra.mxu0 0
    %546 = vmatpush.bf16.msra.mxu0 %v537
    %547 = vmatmul.bf16.gmra.mxu0 %v534
    %v548 = vpop.f32.mrf.mxu0
    %v549 = vadd.f32 0.0, %v548
    %v550 = vpop.f32.mrf.mxu0
    %551 = vdwg.mxu0
    %552 = vrot.lane.b32.xlu0 %v140, 48
    %v553 = vpop.permute.xlu0 %552
    %v555 = vsel %vm118, %v530, 0
    %v558 = vsel %vm217, %v553, 0
    %560 = vmatpush.bf16.msra.mxu0 0
    %561 = vmatpush.bf16.msra.mxu0 0
    %562 = vmatpush.bf16.msra.mxu0 0
    %563 = vmatpush.bf16.msra.mxu0 0
    %564 = vmatpush.bf16.msra.mxu0 0
    %565 = vmatpush.bf16.msra.mxu0 0
    %566 = vmatpush.bf16.msra.mxu0 0
    %567 = vmatpush.bf16.msra.mxu0 %v558
    %568 = vmatmul.bf16.gmra.mxu0 %v555
    %v569 = vpop.f32.mrf.mxu0
    %v570 = vadd.f32 0.0, %v569
    %v571 = vpop.f32.mrf.mxu0
    %572 = vdwg.mxu0
    %v573 = vpack.c.bf16 %v570, %v549
    %v575 = vsel %vm118, %v573, 0
    %v578 = vsel %vm217, %v109, 0
    %580 = vmatpush.bf16.msra.mxu0 0
    %581 = vmatpush.bf16.msra.mxu0 0
    %582 = vmatpush.bf16.msra.mxu0 0
    %583 = vmatpush.bf16.msra.mxu0 0
    %584 = vmatpush.bf16.msra.mxu0 0
    %585 = vmatpush.bf16.msra.mxu0 0
    %586 = vmatpush.bf16.msra.mxu0 0
    %587 = vmatpush.bf16.msra.mxu0 %v578
    %588 = vmatmul.bf16.gmra.mxu0 %v575
    %v589 = vpop.f32.mrf.mxu0
    %v590 = vadd.f32 0.0, %v589
    %v591 = vpop.f32.mrf.mxu0
    %v592 = vadd.f32 0.0, %v591
    %593 = vdwg.mxu0
    %v594 = vadd.f32 %v431, %v590
    %v595 = vadd.f32 %v433, %v592
    %596 = vrot.lane.b32.xlu0 %v115, 104
    %v597 = vpop.permute.xlu0 %596
    %598 = vrot.lane.b32.xlu0 %v115, 72
    %v599 = vpop.permute.xlu0 %598
    %v601 = vsel %vm118, %v597, 0
    %v604 = vsel %vm118, %v599, 0
    %606 = vmatpush.bf16.xpose.msra.mxu0 0
    %607 = vmatpush.bf16.xpose.msra.mxu0 0
    %608 = vmatpush.bf16.xpose.msra.mxu0 0
    %609 = vmatpush.bf16.xpose.msra.mxu0 0
    %610 = vmatpush.bf16.xpose.msra.mxu0 0
    %611 = vmatpush.bf16.xpose.msra.mxu0 0
    %612 = vmatpush.bf16.xpose.msra.mxu0 0
    %613 = vmatpush.bf16.xpose.msra.mxu0 %v604
    %614 = vmatmul.bf16.gmra.mxu0 %v601
    %v615 = vpop.f32.mrf.mxu0
    %v616 = vadd.f32 0.0, %v615
    %v617 = vpop.f32.mrf.mxu0
    %618 = vdwg.mxu0
    %619 = vrot.lane.b32.xlu0 %v140, 104
    %v620 = vpop.permute.xlu0 %619
    %621 = vrot.lane.b32.xlu0 %v140, 72
    %v622 = vpop.permute.xlu0 %621
    %v624 = vsel %vm118, %v620, 0
    %v627 = vsel %vm118, %v622, 0
    %629 = vmatpush.bf16.xpose.msra.mxu0 0
    %630 = vmatpush.bf16.xpose.msra.mxu0 0
    %631 = vmatpush.bf16.xpose.msra.mxu0 0
    %632 = vmatpush.bf16.xpose.msra.mxu0 0
    %633 = vmatpush.bf16.xpose.msra.mxu0 0
    %634 = vmatpush.bf16.xpose.msra.mxu0 0
    %635 = vmatpush.bf16.xpose.msra.mxu0 0
    %636 = vmatpush.bf16.xpose.msra.mxu0 %v627
    %637 = vmatmul.bf16.gmra.mxu0 %v624
    %v638 = vpop.f32.mrf.mxu0
    %v639 = vadd.f32 0.0, %v638
    %v640 = vpop.f32.mrf.mxu0
    %641 = vdwg.mxu0
    %v642 = vsel %vm118, %v616, -inf
    %643 = vmax.xlane.f32.xlu0 %v642
    %v644 = vpop.xlane.xlu0 %643
    %v645 = vsel %vm118, %v639, -inf
    %646 = vmax.xlane.f32.xlu0 %v645
    %v647 = vpop.xlane.xlu0 %646
    %v648 = vsub.f32 %v616, %v644
    %v649 = vsub.f32 %v639, %v647
    %v650 = vmul.f32 %v648, 1.442695
    %v651 = vpow.pop %v650
    %v652 = vmul.f32 %v649, 1.442695
    %v653 = vpow.pop %v652
    %v654 = vsel %vm118, %v651, 0.0
    %655 = vadd.xlane.f32.xlu0 %v654
    %v656 = vpop.xlane.xlu0 %655
    %v657 = vsel %vm118, %v653, 0.0
    %658 = vadd.xlane.f32.xlu0 %v657
    %v659 = vpop.xlane.xlu0 %658
    %v660 = vrcp.pop %v656
    %v661 = vmul.f32 %v656, %v660
    %v662 = vsub.f32 1.0, %v661
    %v663 = vmul.f32 %v660, %v662
    %v664 = vadd.f32 %v660, %v663
    %vm665 = vweird.f32 %v656
    %vm666 = vweird.f32 %v660
    %vm667 = vmor %vm665, %vm666
    %v668 = vsel %vm667, %v660, %v664
    %v669 = vand.u32 2147483647, %v656
    %vm670 = vcmp.eq.f32.partialorder %v669, 8.507059e+37
    %v671 = vand.u32 %v656, 2147483648
    %v672 = vor.u32 1.1754944e-38, %v671
    %v673 = vsel %vm670, %v672, %v668
    %v674 = vmul.f32 %v651, %v673
    %v675 = vrcp.pop %v659
    %v676 = vmul.f32 %v659, %v675
    %v677 = vsub.f32 1.0, %v676
    %v678 = vmul.f32 %v675, %v677
    %v679 = vadd.f32 %v675, %v678
    %vm680 = vweird.f32 %v659
    %vm681 = vweird.f32 %v675
    %vm682 = vmor %vm680, %vm681
    %v683 = vsel %vm682, %v675, %v679
    %v684 = vand.u32 2147483647, %v659
    %vm685 = vcmp.eq.f32.partialorder %v684, 8.507059e+37
    %v686 = vand.u32 %v659, 2147483648
    %v687 = vor.u32 1.1754944e-38, %v686
    %v688 = vsel %vm685, %v687, %v683
    %v689 = vmul.f32 %v653, %v688
    %v690 = vpack.c.bf16 %v674, %v674
    %v691 = vpack.c.bf16 %v689, %v689
    %692 = vrot.lane.b32.xlu0 %v115, 40
    %v693 = vpop.permute.xlu0 %692
    %v695 = vsel %vm118, %v690, 0
    %v698 = vsel %vm217, %v693, 0
    %700 = vmatpush.bf16.msra.mxu0 0
    %701 = vmatpush.bf16.msra.mxu0 0
    %702 = vmatpush.bf16.msra.mxu0 0
    %703 = vmatpush.bf16.msra.mxu0 0
    %704 = vmatpush.bf16.msra.mxu0 0
    %705 = vmatpush.bf16.msra.mxu0 0
    %706 = vmatpush.bf16.msra.mxu0 0
    %707 = vmatpush.bf16.msra.mxu0 %v698
    %708 = vmatmul.bf16.gmra.mxu0 %v695
    %v709 = vpop.f32.mrf.mxu0
    %v710 = vadd.f32 0.0, %v709
    %v711 = vpop.f32.mrf.mxu0
    %712 = vdwg.mxu0
    %713 = vrot.lane.b32.xlu0 %v140, 40
    %v714 = vpop.permute.xlu0 %713
    %v716 = vsel %vm118, %v691, 0
    %v719 = vsel %vm217, %v714, 0
    %721 = vmatpush.bf16.msra.mxu0 0
    %722 = vmatpush.bf16.msra.mxu0 0
    %723 = vmatpush.bf16.msra.mxu0 0
    %724 = vmatpush.bf16.msra.mxu0 0
    %725 = vmatpush.bf16.msra.mxu0 0
    %726 = vmatpush.bf16.msra.mxu0 0
    %727 = vmatpush.bf16.msra.mxu0 0
    %728 = vmatpush.bf16.msra.mxu0 %v719
    %729 = vmatmul.bf16.gmra.mxu0 %v716
    %v730 = vpop.f32.mrf.mxu0
    %v731 = vadd.f32 0.0, %v730
    %v732 = vpop.f32.mrf.mxu0
    %733 = vdwg.mxu0
    %v734 = vpack.c.bf16 %v731, %v710
    %v736 = vsel %vm118, %v734, 0
    %v739 = vsel %vm217, %v110, 0
    %741 = vmatpush.bf16.msra.mxu0 0
    %742 = vmatpush.bf16.msra.mxu0 0
    %743 = vmatpush.bf16.msra.mxu0 0
    %744 = vmatpush.bf16.msra.mxu0 0
    %745 = vmatpush.bf16.msra.mxu0 0
    %746 = vmatpush.bf16.msra.mxu0 0
    %747 = vmatpush.bf16.msra.mxu0 0
    %748 = vmatpush.bf16.msra.mxu0 %v739
    %749 = vmatmul.bf16.gmra.mxu0 %v736
    %v750 = vpop.f32.mrf.mxu0
    %v751 = vadd.f32 0.0, %v750
    %v752 = vpop.f32.mrf.mxu0
    %v753 = vadd.f32 0.0, %v752
    %754 = vdwg.mxu0
    %v755 = vadd.f32 %v594, %v751
    %v756 = vadd.f32 %v595, %v753
    %v757 = vld [vmem:[%s3] sm:$0x1]
    %v759 = vperm.slane %v757, 0
    %v761 = vadd.f32 %v755, %v759
    %v762 = vadd.f32 %v756, %v759
    %763 = vst.msk [vmem:[#allocation8] sm:$0xff] %vm89, %v761
    %764 = vst.msk [vmem:[#allocation8 + $0x8] sm:$0xff] %vm89, %v762
    // Predicated region
    $region30: #{tpu_custom_call.1} parent=1 // pred_check
      _
    $region31: #{tpu_custom_call.1} parent=1 // pred_check_branch
      %766 = sbr.rel (0) target = $region33
    $region32: #{tpu_custom_call.1} parent=1 // pred_region
      %768 = vsyncadd [#allocation4], 0
      %s769 = sshll.u32 [#allocation8], 4
      %s770 = int_to_ptr.vmem [resolvable:$true] %s769
      %s771 = sshll.u32 %s4, 4
      %s772 = int_to_ptr.hbm [resolvable:$true] %s771
      %777 = dma.vmem_to_hbm [thread:$0]  %s770, 256, %s772, [#allocation4], 128, 128, 8
    $region33: #{tpu_custom_call.1} parent=1 // pred_fallthru
      _
    // Predicated region
    $region34: #{tpu_custom_call.1} parent=1 // pred_check
      _
    $region35: #{tpu_custom_call.1} parent=1 // pred_check_branch
      %779 = sbr.rel (0) target = $region37
    $region36: #{tpu_custom_call.1} parent=1 // pred_region
      %781 = dma.done [#allocation4], 256
    $region37: #{tpu_custom_call.1} parent=1 // pred_fallthru
      _
    %782 = vsyncpa [#allocation3], 1
    %783 = vsyncpa [#allocation6], 1
    %784 = vsyncpa [#allocation4], 1

</llo_original>
